<compile_context>
chip_gen: v7x
topology: tpu7x:2x2x1
jax: 0.10.0
libtpu: 0.0.40
codegen_flags: <defaults>
</compile_context>

<pallas_src>
import jax
import jax.numpy as jnp
from jax import lax
from jax.experimental import pallas as pl
from jax.experimental.pallas import tpu as pltpu


def _round_up(x, m):
    return ((x + m - 1) // m) * m


# --------------------------------------------------------------------------
# Kernels
# --------------------------------------------------------------------------
def _linear_relu_kernel(x_ref, w_ref, b_ref, o_ref):
    # x: (bm, D) any float dtype, w: (D, Opad), b: (1, Opad) f32,
    # o: (bm, Opad) f32  -- lane-dense output (Opad % 128 == 0)
    x = x_ref[...].astype(w_ref.dtype)          # in-register ".float()" / cast
    acc = jnp.dot(x, w_ref[...], preferred_element_type=jnp.float32)
    acc = acc + b_ref[...]                      # broadcast (1, Opad)
    o_ref[...] = jnp.maximum(acc, 0.0).astype(o_ref.dtype)


def _linear_relu_gather_kernel(x_ref, w_ref, b_ref, a_ref, o_ref):
    # Fused: q = relu(x @ W + b); q_acted[i] = q[i, a[i]]
    # x: (bm, D), w: (D, Opad), b: (1, Opad), a: (bm, 1) int32, o: (bm, 1) f32
    x = x_ref[...].astype(w_ref.dtype)
    acc = jnp.dot(x, w_ref[...], preferred_element_type=jnp.float32)
    q = jnp.maximum(acc + b_ref[...], 0.0)
    lane_ids = lax.broadcasted_iota(jnp.int32, q.shape, dimension=1)
    mask = lane_ids == a_ref[...]               # (bm, 1) broadcast over lanes
    q_sel = jnp.where(mask, q, 0.0)
    # Exactly one lane matches per row -> lane-sum == gathered value (XLU).
    o_ref[...] = jnp.sum(q_sel, axis=1, keepdims=True).astype(o_ref.dtype)


# --------------------------------------------------------------------------
# Wrappers
# --------------------------------------------------------------------------
def _batch_tiling(batch, block_b):
    bm = min(block_b, _round_up(batch, 8))
    b_pad = _round_up(batch, bm)
    return bm, b_pad


def linear_relu(x, w_t, b, *, block_b=1024):
    """relu(x @ w_t + b) over batch tiles; output is lane-dense (Opad)."""
    B, D = x.shape
    Opad = w_t.shape[1]
    bm, Bp = _batch_tiling(B, block_b)
    if Bp != B:
        x = jnp.pad(x, ((0, Bp - B), (0, 0)))
    out = pl.pallas_call(
        _linear_relu_kernel,
        out_shape=jax.ShapeDtypeStruct((Bp, Opad), jnp.float32),
        grid=(Bp // bm,),
        in_specs=[
            pl.BlockSpec((bm, D), lambda i: (i, 0)),
            pl.BlockSpec((D, Opad), lambda i: (0, 0)),
            pl.BlockSpec((1, Opad), lambda i: (0, 0)),
        ],
        out_specs=pl.BlockSpec((bm, Opad), lambda i: (i, 0)),
        compiler_params=pltpu.CompilerParams(
            dimension_semantics=("parallel",)),
    )(x, w_t, b)
    return out[:B]


def linear_relu_gather(x, w_t, b, action, *, block_b=1024):
    """Fused relu(x @ w_t + b) + per-row gather of one action column."""
    B, D = x.shape
    Opad = w_t.shape[1]
    bm, Bp = _batch_tiling(B, block_b)
    if Bp != B:
        x = jnp.pad(x, ((0, Bp - B), (0, 0)))
        action = jnp.pad(action, ((0, Bp - B), (0, 0)))
    out = pl.pallas_call(
        _linear_relu_gather_kernel,
        out_shape=jax.ShapeDtypeStruct((Bp, 1), jnp.float32),
        grid=(Bp // bm,),
        in_specs=[
            pl.BlockSpec((bm, D), lambda i: (i, 0)),
            pl.BlockSpec((D, Opad), lambda i: (0, 0)),
            pl.BlockSpec((1, Opad), lambda i: (0, 0)),
            pl.BlockSpec((bm, 1), lambda i: (i, 0)),
        ],
        out_specs=pl.BlockSpec((bm, 1), lambda i: (i, 0)),
        compiler_params=pltpu.CompilerParams(
            dimension_semantics=("parallel",)),
    )(x, w_t, b, action)
    return out[:B, 0]


# --------------------------------------------------------------------------
# Module replica
# --------------------------------------------------------------------------
class Network:
    """JAX/Pallas replica of the PyTorch Network module.

    dtype: weight/MXU-input dtype. Default f32 matches the module's
    `.float()` semantics exactly; pass jnp.bfloat16 on v6e/v7x for 2x MXU/HBM
    throughput (accumulation stays f32 either way).
    """

    def __init__(self, input_shape, output_shape, key, dtype=jnp.float32):
        n_input = input_shape[-1]
        n_output = output_shape[0]
        self.n_output = n_output
        self.dtype = dtype

        # Xavier-uniform with gain = calculate_gain('relu') = sqrt(2)
        gain = jnp.sqrt(2.0)
        bound = gain * jnp.sqrt(6.0 / (n_input + n_output))
        k_w, k_b = jax.random.split(key)
        w = jax.random.uniform(
            k_w, (n_output, n_input), jnp.float32, -bound, bound)
        # nn.Linear bias default init: U(-1/sqrt(fan_in), 1/sqrt(fan_in))
        b_bound = 1.0 / jnp.sqrt(jnp.float32(n_input))
        bias = jax.random.uniform(
            k_b, (1, n_output), jnp.float32, -b_bound, b_bound)

        # Store transposed and zero-padded to a lane-dense output width so the
        # kernel writes full 128-lane vregs (padded columns give relu(0)=0).
        o_pad = _round_up(max(n_output, 128), 128)
        w_t = jnp.transpose(w)                         # (n_input, n_output)
        self.w_t = jnp.pad(
            w_t, ((0, 0), (0, o_pad - n_output))).astype(dtype)
        self.b = jnp.pad(
            bias, ((0, 0), (0, o_pad - n_output))).astype(jnp.float32)

    def __call__(self, state, action=None):
        # torch.squeeze(state, 1): drop dim 1 iff it is size 1 (free reshape).
        x = state
        if x.ndim >= 2 and x.shape[1] == 1:
            x = jnp.squeeze(x, axis=1)
        # NOTE: the ".float()" / storage-dtype cast is fused into the kernel.

        if action is None:
            q_pad = linear_relu(x, self.w_t, self.b)
            return q_pad[:, :self.n_output]

        action = action.astype(jnp.int32)
        if action.ndim == 1:
            action = action[:, None]
        if action.shape[-1] == 1:
            # Hot path: gather fused into the single Pallas dispatch.
            q_acted = linear_relu_gather(x, self.w_t, self.b, action)
            return jnp.squeeze(q_acted)
        # Rare multi-column gather: fall back to kernel + take_along_axis.
        q = linear_relu(x, self.w_t, self.b)[:, :self.n_output]
        return jnp.squeeze(jnp.take_along_axis(q, action, axis=1))


# --------------------------------------------------------------------------
# Self-test
# --------------------------------------------------------------------------
if __name__ == "__main__":
    key = jax.random.PRNGKey(0)
    k_net, k_state, k_act = jax.random.split(key, 3)

    batch = 8
    n_input = 32
    n_output = 8

    net = Network(input_shape=(n_input,), output_shape=(n_output,), key=k_net)

    # state shaped (batch, 1, n_input) since the original code squeezes dim 1
    state = jax.random.normal(k_state, (batch, 1, n_input), jnp.float32)
    action = jax.random.randint(k_act, (batch, 1), 0, n_output)

    q = net(state)                       # (batch, n_output)
    q_acted = net(state, action)         # (batch,)
    jax.block_until_ready(q)
    jax.block_until_ready(q_acted)

    # sanity check against plain-JAX reference
    x = jnp.squeeze(state, axis=1)
    q_ref = jnp.maximum(
        x @ net.w_t[:, :n_output].astype(jnp.float32)
        + net.b[:, :n_output], 0.0)
    q_acted_ref = jnp.squeeze(jnp.take_along_axis(q_ref, action, axis=1))

    assert q.shape == (batch, n_output)
    assert q_acted.shape == (batch,)
    assert jnp.allclose(q, q_ref, atol=1e-5), "q mismatch vs reference"
    assert jnp.allclose(q_acted, q_acted_ref, atol=1e-5), \
        "q_acted mismatch vs reference"

    # also exercise a non-multiple-of-8 batch (padding path) and 1-D action
    state2 = jax.random.normal(k_state, (3, 1, n_input), jnp.float32)
    action2 = jax.random.randint(k_act, (3,), 0, n_output)
    q2 = net(state2)
    qa2 = net(state2, action2)
    jax.block_until_ready(qa2)
    q2_ref = jnp.maximum(
        jnp.squeeze(state2, 1) @ net.w_t[:, :n_output].astype(jnp.float32)
        + net.b[:, :n_output], 0.0)
    assert jnp.allclose(q2, q2_ref, atol=1e-5)
    assert jnp.allclose(
        qa2, jnp.take_along_axis(q2_ref, action2[:, None], axis=1)[:, 0],
        atol=1e-5)

    print("KERNEL_OK")
</pallas_src>

<mosaic_0001>
module attributes {stable_mosaic.version = 11 : i64} {
  func.func @_linear_relu_kernel(%arg0: i32, %arg1: memref<8x32xf32, #tpu.memory_space<vmem>>, %arg2: memref<32x128xf32, #tpu.memory_space<vmem>>, %arg3: memref<1x128xf32, #tpu.memory_space<vmem>>, %arg4: memref<8x128xf32, #tpu.memory_space<vmem>>) attributes {dimension_semantics = [#tpu.dimension_semantics<parallel>], iteration_bounds = array<i64: 1>, scalar_prefetch = 0 : i64, scratch_operands = 0 : i64, tpu.core_type = #tpu.core_type<tc>, window_params = [{transform_indices = @transform_0, window_bounds = array<i64: 8, 32>}, {pipeline_mode = #tpu.pipeline_mode<synchronous>, transform_indices = @transform_1, window_bounds = array<i64: 32, 128>}, {pipeline_mode = #tpu.pipeline_mode<synchronous>, transform_indices = @transform_2, window_bounds = array<i64: 1, 128>}, {transform_indices = @transform_3, window_bounds = array<i64: 8, 128>}]} {
    %c0 = arith.constant 0 : index
    %c0_0 = arith.constant 0 : index
    %0 = vector.load %arg1[%c0, %c0_0] : memref<8x32xf32, #tpu.memory_space<vmem>>, vector<8x32xf32>
    %c0_1 = arith.constant 0 : index
    %c0_2 = arith.constant 0 : index
    %1 = vector.load %arg2[%c0_1, %c0_2] : memref<32x128xf32, #tpu.memory_space<vmem>>, vector<32x128xf32>
    %cst = arith.constant dense<0.000000e+00> : vector<8x128xf32>
    %2 = tpu.matmul %0, %1, %cst {dimension_numbers = #tpu.dot_dimension_numbers<[1], [0], [0], [1], [0, 0, 1, 1], [], []>} : vector<8x32xf32>, vector<32x128xf32>, vector<8x128xf32> -> vector<8x128xf32>
    %c0_3 = arith.constant 0 : index
    %c0_4 = arith.constant 0 : index
    %3 = vector.load %arg3[%c0_3, %c0_4] : memref<1x128xf32, #tpu.memory_space<vmem>>, vector<1x128xf32>
    %4 = vector.broadcast %3 : vector<1x128xf32> to vector<8x128xf32>
    %5 = arith.addf %2, %4 : vector<8x128xf32>
    %cst_5 = arith.constant 0.000000e+00 : f32
    %6 = vector.broadcast %cst_5 : f32 to vector<8x128xf32>
    %7 = arith.maximumf %5, %6 : vector<8x128xf32>
    %c0_6 = arith.constant 0 : index
    %c0_7 = arith.constant 0 : index
    %8 = vector.load %arg4[%c0_6, %c0_7] : memref<8x128xf32, #tpu.memory_space<vmem>>, vector<8x128xf32>
    tpu.vector_store %arg4[%c0_6, %c0_7], %7 {strides = array<i32>} : memref<8x128xf32, #tpu.memory_space<vmem>>, vector<8x128xf32>,
    return
  }
  func.func @transform_0(%arg0: i32) -> (i32, i32) {
    %c0_i32 = arith.constant 0 : i32
    %c0_i32_0 = arith.constant 0 : i32
    return %arg0, %c0_i32 : i32, i32
  }
  func.func @transform_1(%arg0: i32) -> (i32, i32) {
    %c0_i32 = arith.constant 0 : i32
    %c0_i32_0 = arith.constant 0 : i32
    %c0_i32_1 = arith.constant 0 : i32
    return %c0_i32, %c0_i32_0 : i32, i32
  }
  func.func @transform_2(%arg0: i32) -> (i32, i32) {
    %c0_i32 = arith.constant 0 : i32
    %c0_i32_0 = arith.constant 0 : i32
    %c0_i32_1 = arith.constant 0 : i32
    return %c0_i32, %c0_i32_0 : i32, i32
  }
  func.func @transform_3(%arg0: i32) -> (i32, i32) {
    %c0_i32 = arith.constant 0 : i32
    %c0_i32_0 = arith.constant 0 : i32
    return %arg0, %c0_i32 : i32, i32
  }
}

</mosaic_0001>

<llo_original>
// kernel: tpu_custom_call.1
$region0: #{tpu_custom_call.1}
  #allocation0 [shape = 'u32[]', space=smem, size = 0x4, offset = 0x4, fixed_abs, tag = 'smem constant byte address 0x4 - core index']
  #allocation1 [shape = 'u32[144,128]{1,0:T(1,128)}', space=vmem, size = 0x12000, scoped, tag = 'internal scratch']
  %s0 = inlined_call_operand.hbm [shape: f32[8,32], index: 0, kind: input, shape index: {}]
  %s1 = inlined_call_operand.hbm [shape: f32[32,128], index: 1, kind: input, shape index: {}]
  %s2 = inlined_call_operand.vmem [shape: f32[1,128], index: 2, kind: input, shape index: {}]
  %s3 = inlined_call_operand.hbm [shape: f32[8,128], index: 3, kind: output, shape index: {}]
  %s4 = sld [smem:[#allocation0]]
  $region30: #{tpu_custom_call.1} parent=0
    _
  %s6 = ssub.s32 1, %s4
  %s7 = scalar_select 0, %s6, %s4
  $region1: #{tpu_custom_call.1} parent=0
    #allocation2 [shape = 'u8[4096]{0}', space=vmem, size = 0x1000, scoped, tag = 'input window, operand 0, single buffered']
    #allocation3 [shape = 's32[1]{0}', space=sflag, size = 0x4, scoped, tag = 'scoped memory for tpu_custom_call.1']
    #allocation4 [shape = 's32[1]{0}', space=sflag, size = 0x4, scoped, tag = 'scoped memory for tpu_custom_call.1']
    #allocation5 [shape = 'u8[16384]{0}', space=vmem, size = 0x4000, scoped, tag = 'input window, operand 1, single buffered']
    #allocation6 [shape = 's32[1]{0}', space=sflag, size = 0x4, scoped, tag = 'scoped memory for tpu_custom_call.1']
    #allocation7 [shape = 'u8[4096]{0}', space=vmem, size = 0x1000, scoped, tag = 'output window, operand 0, single buffered']
    %8 = vsyncpa [#allocation3], 0
    %9 = vsyncpa [#allocation6], 0
    %10 = vsyncpa [#allocation4], 0
    // Predicated region
    $region2: #{tpu_custom_call.1} parent=1 // pred_check
      _
    $region3: #{tpu_custom_call.1} parent=1 // pred_check_branch
      %12 = sbr.rel (0) target = $region5
    $region4: #{tpu_custom_call.1} parent=1 // pred_region
      %s14 = ssub.s32 128, 128
      %15 = vsyncadd [#allocation3], %s14
      %s17 = sshll.u32 [#allocation2], 4
      %s18 = int_to_ptr.vmem [resolvable:$true] %s17
      %20 = dma.hbm_to_vmem [thread:$0]  %s0, 128, %s18, [#allocation3]
    $region5: #{tpu_custom_call.1} parent=1 // pred_fallthru
      _
    // Predicated region
    $region6: #{tpu_custom_call.1} parent=1 // pred_check
      _
    $region7: #{tpu_custom_call.1} parent=1 // pred_check_branch
      %22 = sbr.rel (0) target = $region9
    $region8: #{tpu_custom_call.1} parent=1 // pred_region
      %s24 = ssub.s32 512, 512
      %25 = vsyncadd [#allocation6], %s24
      %s26 = sshll.u32 [#allocation5], 4
      %s27 = int_to_ptr.vmem [resolvable:$true] %s26
      %32 = dma.hbm_to_vmem [thread:$0]  %s1, 512, %s27, [#allocation6], 128, 128, 8
    $region9: #{tpu_custom_call.1} parent=1 // pred_fallthru
      _
    // Predicated region
    $region10: #{tpu_custom_call.1} parent=1 // pred_check
      _
    $region11: #{tpu_custom_call.1} parent=1 // pred_check_branch
      %34 = sbr.rel (0) target = $region13
    $region12: #{tpu_custom_call.1} parent=1 // pred_region
      _
    $region13: #{tpu_custom_call.1} parent=1 // pred_fallthru
      _
    // Predicated region
    $region14: #{tpu_custom_call.1} parent=1 // pred_check
      _
    $region15: #{tpu_custom_call.1} parent=1 // pred_check_branch
      %36 = sbr.rel (0) target = $region17
    $region16: #{tpu_custom_call.1} parent=1 // pred_region
      %37 = dma.done [#allocation3], 128
    $region17: #{tpu_custom_call.1} parent=1 // pred_fallthru
      _
    // Predicated region
    $region18: #{tpu_custom_call.1} parent=1 // pred_check
      _
    $region19: #{tpu_custom_call.1} parent=1 // pred_check_branch
      %39 = sbr.rel (0) target = $region21
    $region20: #{tpu_custom_call.1} parent=1 // pred_region
      %40 = dma.done [#allocation6], 512
    $region21: #{tpu_custom_call.1} parent=1 // pred_fallthru
      _
    %v41 = vld [vmem:[#allocation2] sm:$0xff]
    %v42 = vld [vmem:[#allocation5] sm:$0xff]
    %v43 = vld [vmem:[#allocation5 + $0x8] sm:$0xff]
    %v44 = vld [vmem:[#allocation5 + $0x10] sm:$0xff]
    %v45 = vld [vmem:[#allocation5 + $0x18] sm:$0xff]
    %v46 = vld [vmem:[%s2] sm:$0x1]
    %v48 = vlaneseq
    %v49 = vshrl.u32 %v48, 7
    %v50 = vsub.s32 0, %v49
    %v51 = vrot.slane %v46, %v50
    %vm53 = vcmask 261120
    %v55 = vsel %vm53, %v41, 0
    %57 = vmatprep.subr.mxu0 0.0
    %58 = vmatpush1.msra.mxu0 %v42
    %59 = vmatprep.subr.mxu0 0.0
    %60 = vmatpush1.msra.mxu0 %v43
    %61 = vmatprep.subr.mxu0 0.0
    %62 = vmatpush1.msra.mxu0 %v44
    %63 = vmatprep.subr.mxu0 0.0
    %64 = vmatpush1.msra.mxu0 %v45
    %65 = vmatprep.subr.mxu0 0.0
    %66 = vmatpush1.msra.mxu0 0.0
    %67 = vmatprep.subr.mxu0 0.0
    %68 = vmatpush1.msra.mxu0 0.0
    %69 = vmatprep.subr.mxu0 0.0
    %70 = vmatpush1.msra.mxu0 0.0
    %71 = vmatprep.subr.mxu0 0.0
    %72 = vmatpush1.msra.mxu0 0.0
    %73 = vmatprep.subr.mxu0 0.0
    %74 = vmatpush1.msra.mxu0 0.0
    %75 = vmatprep.subr.mxu0 0.0
    %76 = vmatpush1.msra.mxu0 0.0
    %77 = vmatprep.subr.mxu0 0.0
    %78 = vmatpush1.msra.mxu0 0.0
    %79 = vmatprep.subr.mxu0 0.0
    %80 = vmatpush1.msra.mxu0 0.0
    %81 = vmatprep.subr.mxu0 0.0
    %82 = vmatpush1.msra.mxu0 0.0
    %83 = vmatprep.subr.mxu0 0.0
    %84 = vmatpush1.msra.mxu0 0.0
    %85 = vmatprep.subr.mxu0 0.0
    %86 = vmatpush1.msra.mxu0 0.0
    %87 = vmatprep.subr.mxu0 0.0
    %88 = vmatpush1.msra.mxu0 0.0
    %89 = vmatprep.subr.mxu0 0.0
    %90 = vmatpush1.msra.mxu0 0.0
    %91 = vmatprep.subr.mxu0 0.0
    %92 = vmatpush1.msra.mxu0 0.0
    %93 = vmatprep.subr.mxu0 0.0
    %94 = vmatpush1.msra.mxu0 0.0
    %95 = vmatprep.subr.mxu0 0.0
    %96 = vmatpush1.msra.mxu0 0.0
    %97 = vmatprep.subr.mxu0 0.0
    %98 = vmatpush1.msra.mxu0 0.0
    %99 = vmatprep.subr.mxu0 0.0
    %100 = vmatpush1.msra.mxu0 0.0
    %101 = vmatprep.subr.mxu0 0.0
    %102 = vmatpush1.msra.mxu0 0.0
    %103 = vmatprep.subr.mxu0 0.0
    %104 = vmatpush1.msra.mxu0 0.0
    %105 = vmatprep.subr.mxu0 0.0
    %106 = vmatpush1.msra.mxu0 0.0
    %107 = vmatprep.subr.mxu0 0.0
    %108 = vmatpush1.msra.mxu0 0.0
    %109 = vmatprep.subr.mxu0 0.0
    %110 = vmatpush1.msra.mxu0 0.0
    %111 = vmatprep.subr.mxu0 0.0
    %112 = vmatpush1.msra.mxu0 0.0
    %113 = vmatprep.subr.mxu0 0.0
    %114 = vmatpush1.msra.mxu0 0.0
    %115 = vmatprep.subr.mxu0 0.0
    %116 = vmatpush1.msra.mxu0 0.0
    %117 = vmatprep.subr.mxu0 0.0
    %118 = vmatpush1.msra.mxu0 0.0
    %119 = vmatprep.subr.mxu0 0.0
    %120 = vmatpush1.msra.mxu0 0.0
    %121 = vmatprep.mubr.f32.mxu0 0.0
    %122 = vmatmul.mubr.f32.gmra.mrb[0].mxu0 %v55
    %v123 = vpop.f32.mrb[0].mxu0
    %v124 = vadd.f32 %v51, %v123
    %v125 = vpop.f32.mrb[0].mxu0
    %126 = vdwg.mxu0
    %v127 = vmax.f32 %v124, 0.0
    %128 = vst [vmem:[#allocation7] sm:$0xff] %v127
    // Predicated region
    $region22: #{tpu_custom_call.1} parent=1 // pred_check
      _
    $region23: #{tpu_custom_call.1} parent=1 // pred_check_branch
      %130 = sbr.rel (0) target = $region25
    $region24: #{tpu_custom_call.1} parent=1 // pred_region
      %s132 = ssub.s32 128, 128
      %133 = vsyncadd [#allocation4], %s132
      %s135 = sshll.u32 [#allocation7], 4
      %s136 = int_to_ptr.vmem [resolvable:$true] %s135
      %138 = dma.vmem_to_hbm [thread:$0]  %s136, 128, %s3, [#allocation4]
    $region25: #{tpu_custom_call.1} parent=1 // pred_fallthru
      _
    // Predicated region
    $region26: #{tpu_custom_call.1} parent=1 // pred_check
      _
    $region27: #{tpu_custom_call.1} parent=1 // pred_check_branch
      %140 = sbr.rel (0) target = $region29
    $region28: #{tpu_custom_call.1} parent=1 // pred_region
      %141 = dma.done [#allocation4], 128
    $region29: #{tpu_custom_call.1} parent=1 // pred_fallthru
      _
    %142 = vsyncpa [#allocation3], 1
    %143 = vsyncpa [#allocation6], 1
    %144 = vsyncpa [#allocation4], 1

</llo_original>
